<compile_context>
chip_gen: v6e
topology: v6e:2x2x1
jax: 0.10.0
libtpu: 0.0.40
codegen_flags: <defaults>
</compile_context>

<pallas_src>
import jax
import jax.numpy as jnp
from jax.experimental import pallas as pl
from jax.experimental.pallas import tpu as pltpu


def _encoder_kernel(lens_ref,          # VMEM (TB, 1)      int32
                    x_ref,             # VMEM (TB, N, D_in) f32
                    w1_ref,            # VMEM (D_in, H)     bf16 (BN scale folded in)
                    t1_ref,            # VMEM (1, H)        f32  (folded BN/bias shift)
                    w2_ref,            # VMEM (H, E)        bf16
                    b2_ref,            # VMEM (1, E)        f32
                    out_ref):          # VMEM (TB, E)       f32
    TB, N, D_in = x_ref.shape
    E = out_ref.shape[-1]

    # ---- MLP on all TB*N region vectors at once (MXU: bf16 in, f32 accumulate) ----
    x = x_ref[...].reshape(TB * N, D_in).astype(jnp.bfloat16)
    h = jnp.dot(x, w1_ref[...], preferred_element_type=jnp.float32)      # (TB*N, H)
    h = jnp.maximum(h + t1_ref[...], 0.0)                                # BN shift + ReLU
    e = jnp.dot(h.astype(jnp.bfloat16), w2_ref[...],
                preferred_element_type=jnp.float32)                      # (TB*N, E) f32
    e = e.reshape(TB, N, E)

    # ---- per-image mean of top-k (k = min(2, L)) over the first L valid regions ----
    # N is the second-minor axis -> sublane (XLU) reductions; E stays on lanes.
    neg = jnp.float32(-jnp.inf)
    L = jnp.maximum(lens_ref[...], 1).reshape(TB, 1, 1)          # guard L == 0 / garbage
    row = jax.lax.broadcasted_iota(jnp.int32, (TB, N, E), 1)
    ev = jnp.where(row < L, e, neg)                              # mask invalid regions
    m1 = jnp.max(ev, axis=1, keepdims=True)                      # top-1     (TB, 1, E)
    # knock out the first occurrence of the max in each column -> top-2
    first = jnp.min(jnp.where(ev == m1, row, jnp.int32(N)), axis=1, keepdims=True)
    m2 = jnp.max(jnp.where(row == first, neg, ev), axis=1, keepdims=True)
    pooled = jnp.where(L >= 2, (m1 + m2) * 0.5, m1)              # (TB, 1, E)

    # Per-feature bias commutes with top-k mean -> add once after pooling.
    out_ref[...] = (pooled.reshape(TB, E) + b2_ref[...]).astype(out_ref.dtype)


def encoder_image_aggr(images, image_lengths, params, *, tb=None):
    """images: (B, N, D_in) f32, image_lengths: (B,) int -> (B, E) f32."""
    B, N, D_in = images.shape
    H = params["w1"].shape[1]
    E = params["w2"].shape[1]

    # ---- fold eval-mode BatchNorm1d (+ first-layer bias) into w1 / shift ----
    eps = 1e-5
    s1 = params["bn_gamma"] * jax.lax.rsqrt(params["bn_var"] + eps)          # (H,)
    w1f = (params["w1"].astype(jnp.float32) * s1[None, :]).astype(jnp.bfloat16)
    t1 = ((params["b1"] - params["bn_mean"]) * s1
          + params["bn_beta"]).astype(jnp.float32).reshape(1, H)
    w2 = params["w2"].astype(jnp.bfloat16)
    b2 = params["b2"].astype(jnp.float32).reshape(1, E)

    # ---- batch block size: multiple of 8, aiming for TB*N >= 256 MXU rows ----
    if tb is None:
        tb = pl.cdiv(pl.cdiv(256, N), 8) * 8
    tb = max(8, (tb // 8) * 8)
    if B >= 8:
        tb = min(tb, (B // 8) * 8)        # keep the block inside the array
    else:
        tb = B                            # tiny batch: one full-extent block
    grid = pl.cdiv(B, tb)                 # non-divisible -> Pallas masks the last block

    lens = image_lengths.astype(jnp.int32).reshape(B, 1)

    const = pl.Buffered(1)   # constant index_map -> double buffering is wasted VMEM
    grid_spec = pltpu.PrefetchScalarGridSpec(
        num_scalar_prefetch=0,
        grid=(grid,),
        in_specs=[
            pl.BlockSpec((tb, 1), lambda b: (b, 0)),
            pl.BlockSpec((tb, N, D_in), lambda b: (b, 0, 0)),
            pl.BlockSpec((D_in, H), lambda b: (0, 0), pipeline_mode=const),
            pl.BlockSpec((1, H),    lambda b: (0, 0), pipeline_mode=const),
            pl.BlockSpec((H, E),    lambda b: (0, 0), pipeline_mode=const),
            pl.BlockSpec((1, E),    lambda b: (0, 0), pipeline_mode=const),
        ],
        out_specs=pl.BlockSpec((tb, E), lambda b: (b, 0)),
    )

    return pl.pallas_call(
        _encoder_kernel,
        out_shape=jax.ShapeDtypeStruct((B, E), jnp.float32),
        grid_spec=grid_spec,
        compiler_params=pltpu.CompilerParams(
            dimension_semantics=("parallel",),      # batch blocks shard across TCs (v7x)
            vmem_limit_bytes=48 * 1024 * 1024),     # below v7x's 64 MiB physical VMEM
    )(lens, images.astype(jnp.float32), w1f, t1, w2, b2)


def reference(images, image_lengths, params):
    """Pure-JAX f32 reference mirroring the PyTorch module (eval-mode BN)."""
    eps = 1e-5
    h = images @ params["w1"] + params["b1"]
    h = (h - params["bn_mean"]) / jnp.sqrt(params["bn_var"] + eps)
    h = h * params["bn_gamma"] + params["bn_beta"]
    h = jnp.maximum(h, 0.0)
    e = h @ params["w2"] + params["b2"]                              # (B, N, E)

    outs = []
    for i in range(e.shape[0]):
        L = int(image_lengths[i])
        k = min(2, max(L, 1))
        valid = e[i, :max(L, 1), :]                                  # (L, E)
        topk = jnp.sort(valid, axis=0)[::-1][:k]                     # (k, E)
        outs.append(topk.mean(axis=0))
    return jnp.stack(outs, axis=0)


if __name__ == "__main__":
    B, N = 20, 8
    img_dim, embed_size = 32, 16
    H = embed_size // 2

    key = jax.random.PRNGKey(0)
    kx, kl, k1, k2, k3, k4, k5 = jax.random.split(key, 7)

    def xavier_uniform(k, fan_in, fan_out):
        limit = jnp.sqrt(6.0 / (fan_in + fan_out))
        return jax.random.uniform(k, (fan_in, fan_out), jnp.float32, -limit, limit)

    params = {
        "w1": xavier_uniform(k1, img_dim, H),
        "b1": jnp.zeros((H,), jnp.float32),          # init_weights fills bias with 0
        "bn_gamma": 1.0 + 0.1 * jax.random.normal(k3, (H,), jnp.float32),
        "bn_beta": 0.1 * jax.random.normal(k4, (H,), jnp.float32),
        "bn_mean": 0.1 * jax.random.normal(k5, (H,), jnp.float32),
        "bn_var": 0.9 * jnp.ones((H,), jnp.float32),
        "w2": xavier_uniform(k2, H, embed_size),
        "b2": jnp.zeros((embed_size,), jnp.float32),
    }

    images = jax.random.normal(kx, (B, N, img_dim), jnp.float32)
    image_lengths = jax.random.randint(kl, (B,), 1, N + 1).astype(jnp.int32)

    ref = reference(images, image_lengths, params)

    # Explicit TB=8 -> 3 grid steps, last block partial (exercises masked writeback).
    out = jax.block_until_ready(
        encoder_image_aggr(images, image_lengths, params, tb=8))
    assert out.shape == (B, embed_size), out.shape
    assert jnp.allclose(out, ref, atol=5e-2, rtol=5e-2), (out, ref)   # bf16-matmul tolerance

    # Default TB selection path (TB=16 here -> 2 grid steps, partial last block).
    out2 = jax.block_until_ready(encoder_image_aggr(images, image_lengths, params))
    assert jnp.allclose(out2, ref, atol=5e-2, rtol=5e-2), (out2, ref)

    print("KERNEL_OK")
</pallas_src>

<mosaic_0001>
module attributes {stable_mosaic.version = 11 : i64} {
  func.func @_encoder_kernel(%arg0: i32, %arg1: memref<8x1xi32, #tpu.memory_space<vmem>>, %arg2: memref<8x8x32xf32, #tpu.memory_space<vmem>>, %arg3: memref<32x8xbf16, #tpu.memory_space<vmem>>, %arg4: memref<1x8xf32, #tpu.memory_space<vmem>>, %arg5: memref<8x16xbf16, #tpu.memory_space<vmem>>, %arg6: memref<1x16xf32, #tpu.memory_space<vmem>>, %arg7: memref<8x16xf32, #tpu.memory_space<vmem>>) attributes {dimension_semantics = [#tpu.dimension_semantics<parallel>], iteration_bounds = array<i64: 3>, scalar_prefetch = 0 : i64, scratch_operands = 0 : i64, tpu.core_type = #tpu.core_type<tc>, window_params = [{transform_indices = @transform_0, window_bounds = array<i64: 8, 1>}, {transform_indices = @transform_1, window_bounds = array<i64: 8, 8, 32>}, {pipeline_mode = #tpu.pipeline_mode<synchronous>, transform_indices = @transform_2, window_bounds = array<i64: 32, 8>}, {pipeline_mode = #tpu.pipeline_mode<synchronous>, transform_indices = @transform_3, window_bounds = array<i64: 1, 8>}, {pipeline_mode = #tpu.pipeline_mode<synchronous>, transform_indices = @transform_4, window_bounds = array<i64: 8, 16>}, {pipeline_mode = #tpu.pipeline_mode<synchronous>, transform_indices = @transform_5, window_bounds = array<i64: 1, 16>}, {transform_indices = @transform_6, window_bounds = array<i64: 8, 16>}]} {
    %c0 = arith.constant 0 : index
    %c0_0 = arith.constant 0 : index
    %c0_1 = arith.constant 0 : index
    %0 = vector.load %arg2[%c0, %c0_0, %c0_1] : memref<8x8x32xf32, #tpu.memory_space<vmem>>, vector<8x8x32xf32>
    %1 = vector.shape_cast %0 : vector<8x8x32xf32> to vector<64x32xf32>
    %2 = arith.truncf %1 : vector<64x32xf32> to vector<64x32xbf16>
    %c0_2 = arith.constant 0 : index
    %c0_3 = arith.constant 0 : index
    %3 = vector.load %arg3[%c0_2, %c0_3] : memref<32x8xbf16, #tpu.memory_space<vmem>>, vector<32x8xbf16>
    %cst = arith.constant dense<0.000000e+00> : vector<64x8xf32>
    %4 = tpu.matmul %2, %3, %cst {dimension_numbers = #tpu.dot_dimension_numbers<[1], [0], [0], [1], [0, 0, 1, 1], [], []>} : vector<64x32xbf16>, vector<32x8xbf16>, vector<64x8xf32> -> vector<64x8xf32>
    %c0_4 = arith.constant 0 : index
    %c0_5 = arith.constant 0 : index
    %5 = vector.load %arg4[%c0_4, %c0_5] : memref<1x8xf32, #tpu.memory_space<vmem>>, vector<1x8xf32>
    %6 = vector.broadcast %5 : vector<1x8xf32> to vector<64x8xf32>
    %7 = arith.addf %4, %6 : vector<64x8xf32>
    %cst_6 = arith.constant 0.000000e+00 : f32
    %8 = vector.broadcast %cst_6 : f32 to vector<64x8xf32>
    %9 = arith.maximumf %7, %8 : vector<64x8xf32>
    %10 = arith.truncf %9 : vector<64x8xf32> to vector<64x8xbf16>
    %c0_7 = arith.constant 0 : index
    %c0_8 = arith.constant 0 : index
    %11 = vector.load %arg5[%c0_7, %c0_8] : memref<8x16xbf16, #tpu.memory_space<vmem>>, vector<8x16xbf16>
    %cst_9 = arith.constant dense<0.000000e+00> : vector<64x16xf32>
    %12 = tpu.matmul %10, %11, %cst_9 {dimension_numbers = #tpu.dot_dimension_numbers<[1], [0], [0], [1], [0, 0, 1, 1], [], []>} : vector<64x8xbf16>, vector<8x16xbf16>, vector<64x16xf32> -> vector<64x16xf32>
    %13 = vector.shape_cast %12 : vector<64x16xf32> to vector<8x8x16xf32>
    %c0_10 = arith.constant 0 : index
    %c0_11 = arith.constant 0 : index
    %14 = vector.load %arg1[%c0_10, %c0_11] : memref<8x1xi32, #tpu.memory_space<vmem>>, vector<8x1xi32>
    %c1_i32 = arith.constant 1 : i32
    %15 = vector.broadcast %c1_i32 : i32 to vector<8x1xi32>
    %16 = arith.maxsi %14, %15 : vector<8x1xi32>
    %17 = vector.shape_cast %16 : vector<8x1xi32> to vector<8x1x1xi32>
    %18 = tpu.iota {dimensions = array<i32: 1>} : vector<8x8x16xi32>
    %19 = vector.broadcast %17 : vector<8x1x1xi32> to vector<8x8x16xi32>
    %20 = arith.cmpi slt, %18, %19 : vector<8x8x16xi32>
    %cst_12 = arith.constant 0xFF800000 : f32
    %21 = vector.broadcast %cst_12 : f32 to vector<8x8x16xf32>
    %22 = arith.select %20, %13, %21 : vector<8x8x16xi1>, vector<8x8x16xf32>
    %cst_13 = arith.constant dense<0xFF800000> : vector<8x16xf32>
    %23 = vector.multi_reduction <maximumf>, %22, %cst_13 [1] : vector<8x8x16xf32> to vector<8x16xf32>
    %24 = vector.shape_cast %23 : vector<8x16xf32> to vector<8x1x16xf32>
    %25 = vector.broadcast %24 : vector<8x1x16xf32> to vector<8x8x16xf32>
    %26 = arith.cmpf oeq, %22, %25 : vector<8x8x16xf32>
    %c8_i32 = arith.constant 8 : i32
    %27 = vector.broadcast %c8_i32 : i32 to vector<8x8x16xi32>
    %28 = arith.select %26, %18, %27 : vector<8x8x16xi1>, vector<8x8x16xi32>
    %cst_14 = arith.constant dense<2147483647> : vector<8x16xi32>
    %29 = vector.multi_reduction <minsi>, %28, %cst_14 [1] : vector<8x8x16xi32> to vector<8x16xi32>
    %30 = vector.shape_cast %29 : vector<8x16xi32> to vector<8x1x16xi32>
    %31 = vector.broadcast %30 : vector<8x1x16xi32> to vector<8x8x16xi32>
    %32 = arith.cmpi eq, %18, %31 : vector<8x8x16xi32>
    %cst_15 = arith.constant 0xFF800000 : f32
    %33 = vector.broadcast %cst_15 : f32 to vector<8x8x16xf32>
    %34 = arith.select %32, %33, %22 : vector<8x8x16xi1>, vector<8x8x16xf32>
    %cst_16 = arith.constant dense<0xFF800000> : vector<8x16xf32>
    %35 = vector.multi_reduction <maximumf>, %34, %cst_16 [1] : vector<8x8x16xf32> to vector<8x16xf32>
    %36 = vector.shape_cast %35 : vector<8x16xf32> to vector<8x1x16xf32>
    %c2_i32 = arith.constant 2 : i32
    %37 = vector.broadcast %c2_i32 : i32 to vector<8x1x1xi32>
    %38 = arith.cmpi sge, %17, %37 : vector<8x1x1xi32>
    %39 = arith.addf %24, %36 : vector<8x1x16xf32>
    %cst_17 = arith.constant 5.000000e-01 : f32
    %40 = vector.broadcast %cst_17 : f32 to vector<8x1x16xf32>
    %41 = arith.mulf %39, %40 : vector<8x1x16xf32>
    %42 = vector.shape_cast %38 : vector<8x1x1xi1> to vector<8x1x1xi1>
    %43 = vector.broadcast %42 : vector<8x1x1xi1> to vector<8x1x16xi1>
    %44 = arith.select %43, %41, %24 : vector<8x1x16xi1>, vector<8x1x16xf32>
    %45 = vector.shape_cast %44 : vector<8x1x16xf32> to vector<8x16xf32>
    %c0_18 = arith.constant 0 : index
    %c0_19 = arith.constant 0 : index
    %46 = vector.load %arg6[%c0_18, %c0_19] : memref<1x16xf32, #tpu.memory_space<vmem>>, vector<1x16xf32>
    %47 = vector.broadcast %46 : vector<1x16xf32> to vector<8x16xf32>
    %48 = arith.addf %45, %47 : vector<8x16xf32>
    %c0_20 = arith.constant 0 : index
    %c0_21 = arith.constant 0 : index
    %49 = vector.load %arg7[%c0_20, %c0_21] : memref<8x16xf32, #tpu.memory_space<vmem>>, vector<8x16xf32>
    tpu.vector_store %arg7[%c0_20, %c0_21], %48 {strides = array<i32>} : memref<8x16xf32, #tpu.memory_space<vmem>>, vector<8x16xf32>,
    return
  }
  func.func @transform_0(%arg0: i32) -> (i32, i32) {
    %c0_i32 = arith.constant 0 : i32
    %c0_i32_0 = arith.constant 0 : i32
    return %arg0, %c0_i32 : i32, i32
  }
  func.func @transform_1(%arg0: i32) -> (i32, i32, i32) {
    %c0_i32 = arith.constant 0 : i32
    %c0_i32_0 = arith.constant 0 : i32
    %c0_i32_1 = arith.constant 0 : i32
    return %arg0, %c0_i32, %c0_i32_0 : i32, i32, i32
  }
  func.func @transform_2(%arg0: i32) -> (i32, i32) {
    %c0_i32 = arith.constant 0 : i32
    %c0_i32_0 = arith.constant 0 : i32
    %c0_i32_1 = arith.constant 0 : i32
    return %c0_i32, %c0_i32_0 : i32, i32
  }
  func.func @transform_3(%arg0: i32) -> (i32, i32) {
    %c0_i32 = arith.constant 0 : i32
    %c0_i32_0 = arith.constant 0 : i32
    %c0_i32_1 = arith.constant 0 : i32
    return %c0_i32, %c0_i32_0 : i32, i32
  }
  func.func @transform_4(%arg0: i32) -> (i32, i32) {
    %c0_i32 = arith.constant 0 : i32
    %c0_i32_0 = arith.constant 0 : i32
    %c0_i32_1 = arith.constant 0 : i32
    return %c0_i32, %c0_i32_0 : i32, i32
  }
  func.func @transform_5(%arg0: i32) -> (i32, i32) {
    %c0_i32 = arith.constant 0 : i32
    %c0_i32_0 = arith.constant 0 : i32
    %c0_i32_1 = arith.constant 0 : i32
    return %c0_i32, %c0_i32_0 : i32, i32
  }
  func.func @transform_6(%arg0: i32) -> (i32, i32) {
    %c0_i32 = arith.constant 0 : i32
    %c0_i32_0 = arith.constant 0 : i32
    return %arg0, %c0_i32 : i32, i32
  }
}

</mosaic_0001>

<llo_original>
// kernel: tpu_custom_call.1
$region0: #{tpu_custom_call.1}
  #allocation0 [shape = 'u32[]', space=smem, size = 0x4, offset = 0x4, fixed_abs, tag = 'smem constant byte address 0x4 - core index']
  #allocation1 [shape = 'u32[144,128]{1,0:T(1,128)}', space=vmem, size = 0x12000, scoped, tag = 'internal scratch']
  %s0 = inlined_call_operand.vmem [shape: s32[20,1], index: 0, kind: input, shape index: {}]
  %s1 = inlined_call_operand.hbm [shape: f32[20,8,32], index: 1, kind: input, shape index: {}]
  %s2 = inlined_call_operand.vmem [shape: bf16[32,8], index: 2, kind: input, shape index: {}]
  %s3 = inlined_call_operand.vmem [shape: f32[1,8], index: 3, kind: input, shape index: {}]
  %s4 = inlined_call_operand.vmem [shape: bf16[8,16], index: 4, kind: input, shape index: {}]
  %s5 = inlined_call_operand.vmem [shape: f32[1,16], index: 5, kind: input, shape index: {}]
  %s6 = inlined_call_operand.vmem [shape: f32[20,16], index: 6, kind: output, shape index: {}]
  %s7 = sld [smem:[#allocation0]]
  $region61: #{tpu_custom_call.1} parent=0
    _
  %s9 = ssub.s32 1, %s7
  %s10 = scalar_select 0, %s9, %s7
  $region1: #{tpu_custom_call.1} parent=0
    #allocation2 [shape = 'u8[65536]{0}', space=vmem, size = 0x10000, scoped, tag = 'input window, operand 1']
    #allocation3 [shape = 's32[2]{0}', space=sflag, size = 0x8, scoped, tag = 'scoped memory for tpu_custom_call.1']
    %11 = vsyncpa [#allocation3], 0
    %s12 = scalar_lea.sflag [#allocation3], 1
    %13 = vsyncpa %s12, 0
    loop: start=0, step=1, limit=5
    $region2: #{tpu_custom_call.1} parent=1 // loop_pre_header
      _
    $region3: #{tpu_custom_call.1} parent=1 // loop_header
      %s15 = sphi 0, %s19
      %p16 = scmp.ge.s32.totalorder %s15, 5
      %s25 = sphi 0, %s27
      %s28 = sphi 0, %s25
      %s29 = sphi 0, %s28
      %s45 = sphi 0, %s29
      %s51 = sphi 0, %s53
      %s54 = sphi 0, %s51
      %s55 = sphi 0, %s54
      %s71 = sphi 0, %s55
      %s75 = sphi 0, %s75
      %s77 = sphi 0, %s75
      %s78 = sphi 0, %s77
      %s92 = sphi 0, %s78
      %s96 = sphi 0, %s96
      %s98 = sphi 0, %s96
      %s99 = sphi 0, %s98
      %s113 = sphi 0, %s99
      %s117 = sphi 0, %s117
      %s119 = sphi 0, %s117
      %s120 = sphi 0, %s119
      %s134 = sphi 0, %s120
      %s138 = sphi 0, %s138
      %s140 = sphi 0, %s138
      %s141 = sphi 0, %s140
      %s155 = sphi 0, %s141
      %s161 = sphi 0, %s163
      %s164 = sphi 0, %s161
      %s165 = sphi 0, %s164
      %s181 = sphi 0, %s165
    $region4: #{tpu_custom_call.1} parent=1 // loop_header_branch
      %18 = sbr.rel (%p16) target = $region8
    $region5: #{tpu_custom_call.1} parent=1 // loop_body
      %s20 = ssub.s32 %s15, 1
      %s21 = ssub.s32 %s15, 2
      %s22 = sadd.s32 %s15, 1
      %s23 = ssub.s32 %s15, %s22
      %p24 = scmp.eq.s32.totalorder %s23, 0
      %s26 = sadd.s32 %s25, 1
      %s27 = scalar_select %p24, %s25, %s26
      %p30 = pneg %p24
      %p31 = scmp.eq.s32.totalorder %s15, 2
      %p32 = por %p30, %p31
      %p33 = scmp.ne.s32.totalorder %s25, %s28
      %p34 = scmp.eq.s32.totalorder %s15, 0
      %p35 = por %p33, %p34
      %p36 = scmp.ne.s32.totalorder %s25, %s28
      %p37 = scmp.eq.s32.totalorder %s20, 2
      %p38 = por %p36, %p37
      %p39 = scmp.ne.s32.totalorder %s28, %s29
      %p40 = scmp.eq.s32.totalorder %s20, 0
      %p41 = por %p39, %p40
      %p42 = scmp.ne.s32.totalorder %s28, %s29
      %p43 = scmp.eq.s32.totalorder %s21, 2
      %p44 = por %p42, %p43
      %p46 = scmp.ne.s32.totalorder %s29, %s45
      %p47 = scmp.eq.s32.totalorder %s21, 0
      %p48 = por %p46, %p47
      %s49 = ssub.s32 %s15, %s22
      %p50 = scmp.eq.s32.totalorder %s49, 0
      %s52 = sadd.s32 %s51, 1
      %s53 = scalar_select %p50, %s51, %s52
      %p56 = pneg %p50
      %p57 = scmp.eq.s32.totalorder %s15, 2
      %p58 = por %p56, %p57
      %p59 = scmp.ne.s32.totalorder %s51, %s54
      %p60 = scmp.eq.s32.totalorder %s15, 0
      %p61 = por %p59, %p60
      %p62 = scmp.ne.s32.totalorder %s51, %s54
      %p63 = scmp.eq.s32.totalorder %s20, 2
      %p64 = por %p62, %p63
      %p65 = scmp.ne.s32.totalorder %s54, %s55
      %p66 = scmp.eq.s32.totalorder %s20, 0
      %p67 = por %p65, %p66
      %p68 = scmp.ne.s32.totalorder %s54, %s55
      %p69 = scmp.eq.s32.totalorder %s21, 2
      %p70 = por %p68, %p69
      %p72 = scmp.ne.s32.totalorder %s55, %s71
      %p73 = scmp.eq.s32.totalorder %s21, 0
      %p74 = por %p72, %p73
      %s76 = sadd.s32 %s75, 1
      %p79 = scmp.eq.s32.totalorder %s15, 2
      %p80 = scmp.ne.s32.totalorder %s75, %s77
      %p81 = scmp.eq.s32.totalorder %s15, 0
      %p82 = por %p80, %p81
      %p83 = scmp.ne.s32.totalorder %s75, %s77
      %p84 = scmp.eq.s32.totalorder %s20, 2
      %p85 = por %p83, %p84
      %p86 = scmp.ne.s32.totalorder %s77, %s78
      %p87 = scmp.eq.s32.totalorder %s20, 0
      %p88 = por %p86, %p87
      %p89 = scmp.ne.s32.totalorder %s77, %s78
      %p90 = scmp.eq.s32.totalorder %s21, 2
      %p91 = por %p89, %p90
      %p93 = scmp.ne.s32.totalorder %s78, %s92
      %p94 = scmp.eq.s32.totalorder %s21, 0
      %p95 = por %p93, %p94
      %s97 = sadd.s32 %s96, 1
      %p100 = scmp.eq.s32.totalorder %s15, 2
      %p101 = scmp.ne.s32.totalorder %s96, %s98
      %p102 = scmp.eq.s32.totalorder %s15, 0
      %p103 = por %p101, %p102
      %p104 = scmp.ne.s32.totalorder %s96, %s98
      %p105 = scmp.eq.s32.totalorder %s20, 2
      %p106 = por %p104, %p105
      %p107 = scmp.ne.s32.totalorder %s98, %s99
      %p108 = scmp.eq.s32.totalorder %s20, 0
      %p109 = por %p107, %p108
      %p110 = scmp.ne.s32.totalorder %s98, %s99
      %p111 = scmp.eq.s32.totalorder %s21, 2
      %p112 = por %p110, %p111
      %p114 = scmp.ne.s32.totalorder %s99, %s113
      %p115 = scmp.eq.s32.totalorder %s21, 0
      %p116 = por %p114, %p115
      %s118 = sadd.s32 %s117, 1
      %p121 = scmp.eq.s32.totalorder %s15, 2
      %p122 = scmp.ne.s32.totalorder %s117, %s119
      %p123 = scmp.eq.s32.totalorder %s15, 0
      %p124 = por %p122, %p123
      %p125 = scmp.ne.s32.totalorder %s117, %s119
      %p126 = scmp.eq.s32.totalorder %s20, 2
      %p127 = por %p125, %p126
      %p128 = scmp.ne.s32.totalorder %s119, %s120
      %p129 = scmp.eq.s32.totalorder %s20, 0
      %p130 = por %p128, %p129
      %p131 = scmp.ne.s32.totalorder %s119, %s120
      %p132 = scmp.eq.s32.totalorder %s21, 2
      %p133 = por %p131, %p132
      %p135 = scmp.ne.s32.totalorder %s120, %s134
      %p136 = scmp.eq.s32.totalorder %s21, 0
      %p137 = por %p135, %p136
      %s139 = sadd.s32 %s138, 1
      %p142 = scmp.eq.s32.totalorder %s15, 2
      %p143 = scmp.ne.s32.totalorder %s138, %s140
      %p144 = scmp.eq.s32.totalorder %s15, 0
      %p145 = por %p143, %p144
      %p146 = scmp.ne.s32.totalorder %s138, %s140
      %p147 = scmp.eq.s32.totalorder %s20, 2
      %p148 = por %p146, %p147
      %p149 = scmp.ne.s32.totalorder %s140, %s141
      %p150 = scmp.eq.s32.totalorder %s20, 0
      %p151 = por %p149, %p150
      %p152 = scmp.ne.s32.totalorder %s140, %s141
      %p153 = scmp.eq.s32.totalorder %s21, 2
      %p154 = por %p152, %p153
      %p156 = scmp.ne.s32.totalorder %s141, %s155
      %p157 = scmp.eq.s32.totalorder %s21, 0
      %p158 = por %p156, %p157
      %s159 = ssub.s32 %s15, %s22
      %p160 = scmp.eq.s32.totalorder %s159, 0
      %s162 = sadd.s32 %s161, 1
      %s163 = scalar_select %p160, %s161, %s162
      %p166 = pneg %p160
      %p167 = scmp.eq.s32.totalorder %s15, 2
      %p168 = por %p166, %p167
      %p169 = scmp.ne.s32.totalorder %s161, %s164
      %p170 = scmp.eq.s32.totalorder %s15, 0
      %p171 = por %p169, %p170
      %p172 = scmp.ne.s32.totalorder %s161, %s164
      %p173 = scmp.eq.s32.totalorder %s20, 2
      %p174 = por %p172, %p173
      %p175 = scmp.ne.s32.totalorder %s164, %s165
      %p176 = scmp.eq.s32.totalorder %s20, 0
      %p177 = por %p175, %p176
      %p178 = scmp.ne.s32.totalorder %s164, %s165
      %p179 = scmp.eq.s32.totalorder %s21, 2
      %p180 = por %p178, %p179
      %p182 = scmp.ne.s32.totalorder %s165, %s181
      %p183 = scmp.eq.s32.totalorder %s21, 0
      %p184 = por %p182, %p183
      %p185 = scmp.le.s32.totalorder 1, %s15
      %p186 = scmp.lt.s32.totalorder %s15, 4
      %p187 = pnand %p185, %p186
      %p188 = pneg %p187
      // Predicated region
      $region9: #{tpu_custom_call.1} parent=5 // pred_check
        _
      $region10: #{tpu_custom_call.1} parent=5 // pred_check_branch
        %190 = sbr.rel (%p187) target = $region12
      $region11: #{tpu_custom_call.1} parent=5 // pred_region
        %s191 = ssub.s32 %s15, 1
        // Predicated region
        $region13: #{tpu_custom_call.1} parent=11 // pred_check
          %p192 = pneg %p88
        $region14: #{tpu_custom_call.1} parent=11 // pred_check_branch
          %194 = sbr.rel (%p192) target = $region16
        $region15: #{tpu_custom_call.1} parent=11 // pred_region
          _
        $region16: #{tpu_custom_call.1} parent=11 // pred_fallthru
          _
        // Predicated region
        $region17: #{tpu_custom_call.1} parent=11 // pred_check
          %p195 = pneg %p109
        $region18: #{tpu_custom_call.1} parent=11 // pred_check_branch
          %197 = sbr.rel (%p195) target = $region20
        $region19: #{tpu_custom_call.1} parent=11 // pred_region
          _
        $region20: #{tpu_custom_call.1} parent=11 // pred_fallthru
          _
        // Predicated region
        $region21: #{tpu_custom_call.1} parent=11 // pred_check
          %p198 = pneg %p130
        $region22: #{tpu_custom_call.1} parent=11 // pred_check_branch
          %200 = sbr.rel (%p198) target = $region24
        $region23: #{tpu_custom_call.1} parent=11 // pred_region
          _
        $region24: #{tpu_custom_call.1} parent=11 // pred_fallthru
          _
        // Predicated region
        $region25: #{tpu_custom_call.1} parent=11 // pred_check
          %p201 = pneg %p151
        $region26: #{tpu_custom_call.1} parent=11 // pred_check_branch
          %203 = sbr.rel (%p201) target = $region28
        $region27: #{tpu_custom_call.1} parent=11 // pred_region
          _
        $region28: #{tpu_custom_call.1} parent=11 // pred_fallthru
          _
      $region12: #{tpu_custom_call.1} parent=5 // pred_fallthru
        _
      %p204 = scmp.lt.s32.totalorder %s15, 3
      // Predicated region
      $region29: #{tpu_custom_call.1} parent=5 // pred_check
        %p205 = pneg %p204
      $region30: #{tpu_custom_call.1} parent=5 // pred_check_branch
        %207 = sbr.rel (%p205) target = $region32
      $region31: #{tpu_custom_call.1} parent=5 // pred_region
        // Predicated region
        $region33: #{tpu_custom_call.1} parent=31 // pred_check
          %p208 = pneg %p35
        $region34: #{tpu_custom_call.1} parent=31 // pred_check_branch
          %210 = sbr.rel (%p208) target = $region36
        $region35: #{tpu_custom_call.1} parent=31 // pred_region
          %p211 = scmp.lt.s32.totalorder %s15, 2
          %s212 = scalar_select %p211, %s15, 2
          %s213 = smul.addr %s212, 8
          %s214 = scalar_lea.vmem %s0, %s213
        $region36: #{tpu_custom_call.1} parent=31 // pred_fallthru
          _
        // Predicated region
        $region37: #{tpu_custom_call.1} parent=31 // pred_check
          %p215 = pneg %p61
        $region38: #{tpu_custom_call.1} parent=31 // pred_check_branch
          %217 = sbr.rel (%p215) target = $region40
        $region39: #{tpu_custom_call.1} parent=31 // pred_region
          %s218 = sand.u32 %s51, 1
          %s219 = scalar_lea.sflag [#allocation3], %s218
          %s220 = sand.u32 %s51, 1
          %s221 = smul.addr %s220, 64
          %s222 = scalar_lea.vmem [#allocation2], %s221
          %s223 = smul.u32 8, %s15
          %s224 = ssub.s32 20, %s223
          %p225 = scmp.lt.s32.totalorder %s224, 8
          %s226 = scalar_select %p225, %s224, 8
          %s227 = smul.u32 128, %s226
          %s229 = ssub.s32 1024, %s227
          %230 = vsyncadd %s219, %s229
          %p231 = scmp.ne.s32.totalorder 0, %s227
          %s232 = smul.addr %s223, 128
          %s233 = scalar_lea.hbm %s1, %s232
          %s234 = smul.u32 8, %s226
          %s235 = sshll.u32 %s222, 4
          %s236 = int_to_ptr.vmem [resolvable:$true] %s235
          %s237 = sshll.u32 %s234, 4
          %241 = dma.hbm_to_vmem [thread:$0]  (%p231), %s233, %s237, %s236, %s219, 128, 128, 8
        $region40: #{tpu_custom_call.1} parent=31 // pred_fallthru
          _
      $region32: #{tpu_custom_call.1} parent=5 // pred_fallthru
        _
      %p242 = scmp.le.s32.totalorder 1, %s15
      %p243 = scmp.lt.s32.totalorder %s15, 4
      %p244 = pnand %p242, %p243
      %p245 = pneg %p244
      // Predicated region
      $region41: #{tpu_custom_call.1} parent=5 // pred_check
        _
      $region42: #{tpu_custom_call.1} parent=5 // pred_check_branch
        %247 = sbr.rel (%p244) target = $region44
      $region43: #{tpu_custom_call.1} parent=5 // pred_region
        %s248 = ssub.s32 %s15, 1
        %s249 = sand.u32 %s54, 1
        %s250 = scalar_lea.sflag [#allocation3], %s249
        %s251 = sand.u32 %s54, 1
        %s252 = smul.addr %s251, 64
        %s253 = scalar_lea.vmem [#allocation2], %s252
        // Predicated region
        $region45: #{tpu_custom_call.1} parent=43 // pred_check
          %p254 = pneg %p67
        $region46: #{tpu_custom_call.1} parent=43 // pred_check_branch
          %256 = sbr.rel (%p254) target = $region48
        $region47: #{tpu_custom_call.1} parent=43 // pred_region
          %257 = dma.done %s250, 1024
        $region48: #{tpu_custom_call.1} parent=43 // pred_fallthru
          _
        %p258 = scmp.lt.s32.totalorder %s20, 2
        %s259 = scalar_select %p258, %s20, 2
        %s260 = smul.addr %s259, 8
        %s261 = scalar_lea.vmem %s0, %s260
        %p262 = pneg %p41
        %p263 = pneg %p38
        %s264 = sand.u32 %s54, 1
        %s265 = scalar_lea.sflag [#allocation3], %s264
        %s266 = sand.u32 %s54, 1
        %s267 = smul.addr %s266, 64
        %s268 = scalar_lea.vmem [#allocation2], %s267
        %p269 = pneg %p67
        %p270 = pneg %p64
        %p271 = pneg %p88
        %p272 = pneg %p85
        %p273 = pneg %p109
        %p274 = pneg %p106
        %p275 = pneg %p130
        %p276 = pneg %p127
        %p277 = pneg %p151
        %p278 = pneg %p148
        %p279 = pneg %p177
        %p280 = pneg %p174
        %p281 = scmp.lt.s32.totalorder %s20, 2
        %s282 = scalar_select %p281, %s20, 2
        %s283 = smul.addr %s282, 8
        %s284 = scalar_lea.vmem %s6, %s283
        %p285 = scmp.lt.s32.totalorder %s20, 2
        %s286 = scalar_select %p285, %s20, 2
        %s287 = smul.addr %s286, 8
        %s288 = scalar_lea.vmem %s0, %s287
        %s289 = smul.u32 8, %s20
        %s290 = ssub.s32 20, %s289
        %p291 = scmp.lt.s32.totalorder %s290, 8
        %s292 = scalar_select %p291, %s290, 8
        %s293 = smul.u32 128, %s292
        %p294 = scmp.lt.s32.totalorder %s20, 2
        %s295 = scalar_select %p294, %s20, 2
        %s296 = smul.addr %s295, 8
        %s297 = scalar_lea.vmem %s6, %s296
        %v299 = vld [vmem:[%s253] sm:$0xff]
        %v300 = vld [vmem:[%s253 + $0x8] sm:$0xff]
        %v301 = vld [vmem:[%s253 + $0x10] sm:$0xff]
        %v302 = vld [vmem:[%s253 + $0x18] sm:$0xff]
        %v303 = vld [vmem:[%s253 + $0x20] sm:$0xff]
        %v304 = vld [vmem:[%s253 + $0x28] sm:$0xff]
        %v305 = vld [vmem:[%s253 + $0x30] sm:$0xff]
        %v306 = vld [vmem:[%s253 + $0x38] sm:$0xff]
        %v307 = vpack.c.bf16 %v300, %v299
        %v308 = vpack.c.bf16 %v302, %v301
        %v309 = vpack.c.bf16 %v304, %v303
        %v310 = vpack.c.bf16 %v306, %v305
        %v311 = vld [vmem:[%s2] sm:$0xf]
        %v312 = vld [vmem:[%s2 + $0x4] sm:$0xf]
        %v313 = vld [vmem:[%s2 + $0x8] sm:$0xf]
        %v314 = vld [vmem:[%s2 + $0xc] sm:$0xf]
        %v315 = vld [vmem:[%s3] sm:$0x1]
        %v317 = vlaneseq
        %v318 = vshrl.u32 %v317, 7
        %v319 = vsub.s32 0, %v318
        %v320 = vrot.slane %v315, %v319
        %v326 = vunpack.c.l.b16 %v311
        %v327 = vunpack.c.l.b16 %v312
        %v328 = vunpack.c.l.b16 %v313
        %v329 = vunpack.c.l.b16 %v314
        %v330 = vpack.c.b16 %v327, %v326
        %v331 = vpack.c.b16 %v329, %v328
        %vm334 = vcmask 261120
        %v336 = vsel %vm334, %v307, 0
        %v339 = vsel %vm334, %v308, 0
        %v342 = vsel %vm334, %v309, 0
        %v345 = vsel %vm334, %v310, 0
        %347 = vmatprep.subr.bf16.mxu0 0
        %348 = vmatpush1.bf16.msra.mxu0 0
        %349 = vmatprep.subr.bf16.mxu0 0
        %350 = vmatpush1.bf16.msra.mxu0 0
        %351 = vmatprep.subr.bf16.mxu0 0
        %352 = vmatpush1.bf16.msra.mxu0 0
        %353 = vmatprep.subr.bf16.mxu0 0
        %354 = vmatpush1.bf16.msra.mxu0 0
        %355 = vmatprep.subr.bf16.mxu0 0
        %356 = vmatpush1.bf16.msra.mxu0 0
        %357 = vmatprep.subr.bf16.mxu0 0
        %358 = vmatpush1.bf16.msra.mxu0 0
        %359 = vmatprep.subr.bf16.mxu0 0
        %360 = vmatpush1.bf16.msra.mxu0 %v331
        %361 = vmatprep.subr.bf16.mxu0 0
        %362 = vmatpush1.bf16.msra.mxu0 %v330
        %363 = vmatprep.subr.bf16.mxu0 0
        %364 = vmatpush2.bf16.msra.mxu0 0
        %365 = vmatprep.subr.bf16.mxu0 0
        %366 = vmatpush2.bf16.msra.mxu0 0
        %367 = vmatprep.subr.bf16.mxu0 0
        %368 = vmatpush2.bf16.msra.mxu0 0
        %369 = vmatprep.subr.bf16.mxu0 0
        %370 = vmatpush2.bf16.msra.mxu0 0
        %371 = vmatprep.subr.bf16.mxu0 0
        %372 = vmatpush2.bf16.msra.mxu0 0
        %373 = vmatprep.subr.bf16.mxu0 0
        %374 = vmatpush2.bf16.msra.mxu0 0
        %375 = vmatprep.subr.bf16.mxu0 0
        %376 = vmatpush2.bf16.msra.mxu0 0
        %377 = vmatprep.subr.bf16.mxu0 0
        %378 = vmatpush2.bf16.msra.mxu0 0
        %379 = vmatprep.mubr.bf16.mxu0 0
        %380 = vmatmul.mubr.bf16.gmra.mxu0 %v336
        %v381 = vpop.f32.mrf.mxu0
        %v382 = vadd.f32 %v320, %v381
        %v383 = vpop.f32.mrf.mxu0
        %v384 = vpop.f32.mrf.mxu0
        %v385 = vadd.f32 %v320, %v384
        %v386 = vpop.f32.mrf.mxu0
        %387 = vmatprep.mubr.bf16.mxu0 0
        %388 = vmatmul.mubr.bf16.gmra.mxu0 %v339
        %v389 = vpop.f32.mrf.mxu0
        %v390 = vadd.f32 %v320, %v389
        %v391 = vpop.f32.mrf.mxu0
        %v392 = vpop.f32.mrf.mxu0
        %v393 = vadd.f32 %v320, %v392
        %v394 = vpop.f32.mrf.mxu0
        %395 = vmatprep.mubr.bf16.mxu0 0
        %396 = vmatmul.mubr.bf16.gmra.mxu0 %v342
        %v397 = vpop.f32.mrf.mxu0
        %v398 = vadd.f32 %v320, %v397
        %v399 = vpop.f32.mrf.mxu0
        %v400 = vpop.f32.mrf.mxu0
        %v401 = vadd.f32 %v320, %v400
        %v402 = vpop.f32.mrf.mxu0
        %403 = vmatprep.mubr.bf16.mxu0 0
        %404 = vmatmul.mubr.bf16.gmra.mxu0 %v345
        %v405 = vpop.f32.mrf.mxu0
        %v406 = vadd.f32 %v320, %v405
        %v407 = vpop.f32.mrf.mxu0
        %v408 = vpop.f32.mrf.mxu0
        %v409 = vadd.f32 %v320, %v408
        %v410 = vpop.f32.mrf.mxu0
        %411 = vdwg.mxu0
        %v412 = vmax.f32 %v382, 0.0
        %v413 = vmax.f32 %v385, 0.0
        %v414 = vmax.f32 %v390, 0.0
        %v415 = vmax.f32 %v393, 0.0
        %v416 = vmax.f32 %v398, 0.0
        %v417 = vmax.f32 %v401, 0.0
        %v418 = vmax.f32 %v406, 0.0
        %v419 = vmax.f32 %v409, 0.0
        %v420 = vpack.c.bf16 %v413, %v412
        %v421 = vpack.c.bf16 %v415, %v414
        %v422 = vpack.c.bf16 %v417, %v416
        %v423 = vpack.c.bf16 %v419, %v418
        %v424 = vld [vmem:[%s4] sm:$0xf]
        %vm425 = vcmask 64512
        %v427 = vsel %vm425, %v420, 0
        %v430 = vsel %vm425, %v421, 0
        %v433 = vsel %vm425, %v422, 0
        %v436 = vsel %vm425, %v423, 0
        %vm438 = vcmask 1043456
        %v440 = vsel %vm438, %v424, 0
        %442 = vmatprep.subr.bf16.mxu0 0
        %443 = vmatpush1.bf16.msra.mxu0 0
        %444 = vmatprep.subr.bf16.mxu0 0
        %445 = vmatpush1.bf16.msra.mxu0 0
        %446 = vmatprep.subr.bf16.mxu0 0
        %447 = vmatpush1.bf16.msra.mxu0 0
        %448 = vmatprep.subr.bf16.mxu0 0
        %449 = vmatpush1.bf16.msra.mxu0 0
        %450 = vmatprep.subr.bf16.mxu0 0
        %451 = vmatpush1.bf16.msra.mxu0 0
        %452 = vmatprep.subr.bf16.mxu0 0
        %453 = vmatpush1.bf16.msra.mxu0 0
        %454 = vmatprep.subr.bf16.mxu0 0
        %455 = vmatpush1.bf16.msra.mxu0 0
        %456 = vmatprep.subr.bf16.mxu0 0
        %457 = vmatpush1.bf16.msra.mxu0 %v440
        %458 = vmatprep.subr.bf16.mxu0 0
        %459 = vmatpush2.bf16.msra.mxu0 0
        %460 = vmatprep.subr.bf16.mxu0 0
        %461 = vmatpush2.bf16.msra.mxu0 0
        %462 = vmatprep.subr.bf16.mxu0 0
        %463 = vmatpush2.bf16.msra.mxu0 0
        %464 = vmatprep.subr.bf16.mxu0 0
        %465 = vmatpush2.bf16.msra.mxu0 0
        %466 = vmatprep.subr.bf16.mxu0 0
        %467 = vmatpush2.bf16.msra.mxu0 0
        %468 = vmatprep.subr.bf16.mxu0 0
        %469 = vmatpush2.bf16.msra.mxu0 0
        %470 = vmatprep.subr.bf16.mxu0 0
        %471 = vmatpush2.bf16.msra.mxu0 0
        %472 = vmatprep.subr.bf16.mxu0 0
        %473 = vmatpush2.bf16.msra.mxu0 0
        %474 = vmatprep.mubr.bf16.mxu0 0
        %475 = vmatmul.mubr.bf16.gmra.mxu0 %v427
        %v476 = vpop.f32.mrf.mxu0
        %v477 = vadd.f32 0.0, %v476
        %v478 = vpop.f32.mrf.mxu0
        %v479 = vpop.f32.mrf.mxu0
        %v480 = vadd.f32 0.0, %v479
        %v481 = vpop.f32.mrf.mxu0
        %482 = vmatprep.mubr.bf16.mxu0 0
        %483 = vmatmul.mubr.bf16.gmra.mxu0 %v430
        %v484 = vpop.f32.mrf.mxu0
        %v485 = vadd.f32 0.0, %v484
        %v486 = vpop.f32.mrf.mxu0
        %v487 = vpop.f32.mrf.mxu0
        %v488 = vadd.f32 0.0, %v487
        %v489 = vpop.f32.mrf.mxu0
        %490 = vmatprep.mubr.bf16.mxu0 0
        %491 = vmatmul.mubr.bf16.gmra.mxu0 %v433
        %v492 = vpop.f32.mrf.mxu0
        %v493 = vadd.f32 0.0, %v492
        %v494 = vpop.f32.mrf.mxu0
        %v495 = vpop.f32.mrf.mxu0
        %v496 = vadd.f32 0.0, %v495
        %v497 = vpop.f32.mrf.mxu0
        %498 = vmatprep.mubr.bf16.mxu0 0
        %499 = vmatmul.mubr.bf16.gmra.mxu0 %v436
        %v500 = vpop.f32.mrf.mxu0
        %v501 = vadd.f32 0.0, %v500
        %v502 = vpop.f32.mrf.mxu0
        %v503 = vpop.f32.mrf.mxu0
        %v504 = vadd.f32 0.0, %v503
        %v505 = vpop.f32.mrf.mxu0
        %506 = vdwg.mxu0
        %v507 = vld [vmem:[%s288] sm:$0xff]
        %vm508 = vcmp.gt.s32.totalorder %v507, 1
        %v509 = vsel %vm508, %v507, 1
        %v510 = vcombine.high %v509, %v509
        %v512 = vunpack.c.l.s4 1966171168
        %v513 = vunpack.c.0.s8 %v512
        %v514 = vlaneseq
        %v515 = vshrl.u32 %v514, 7
        %v516 = vsub.s32 %v513, %v515
        %v517 = vrot.slane %v509, %v516
        %v519 = vunpack.c.l.s4 1966171168
        %v520 = vunpack.c.0.s8 %v519
        %v521 = vlaneseq
        %v522 = vshrl.u32 %v521, 7
        %v523 = vsub.s32 %v520, %v522
        %v524 = vrot.slane %v510, %v523
        %v525 = vcombine.high %v517, %v517
        %v526 = vcombine.high %v524, %v524
        %v528 = vunpack.c.l.s4 1966171168
        %v529 = vunpack.c.0.s8 %v528
        %v530 = vlaneseq
        %v531 = vshrl.u32 %v530, 7
        %v532 = vsub.s32 %v529, %v531
        %v533 = vrot.slane %v517, %v532
        %v535 = vunpack.c.l.s4 1966171168
        %v536 = vunpack.c.0.s8 %v535
        %v537 = vlaneseq
        %v538 = vshrl.u32 %v537, 7
        %v539 = vsub.s32 %v536, %v538
        %v540 = vrot.slane %v524, %v539
        %v542 = vunpack.c.l.s4 1966171168
        %v543 = vunpack.c.0.s8 %v542
        %v544 = vlaneseq
        %v545 = vshrl.u32 %v544, 7
        %v546 = vsub.s32 %v543, %v545
        %v547 = vrot.slane %v525, %v546
        %v549 = vunpack.c.l.s4 1966171168
        %v550 = vunpack.c.0.s8 %v549
        %v551 = vlaneseq
        %v552 = vshrl.u32 %v551, 7
        %v553 = vsub.s32 %v550, %v552
        %v554 = vrot.slane %v526, %v553
        %v555 = vcombine.high %v533, %v533
        %v556 = vcombine.high %v540, %v540
        %v557 = vcombine.high %v547, %v547
        %v558 = vcombine.high %v554, %v554
        %v559 = vlaneseq
        %v560 = vshrl.u32 %v559, 7
        %v561 = vlaneseq
        %v562 = vshrl.u32 %v561, 7
        %v563 = vsub.s32 0, %v562
        %v564 = vrot.slane %v533, %v563
        %v565 = vlaneseq
        %v566 = vshrl.u32 %v565, 7
        %v567 = vsub.s32 0, %v566
        %v568 = vrot.slane %v547, %v567
        %v569 = vlaneseq
        %v570 = vshrl.u32 %v569, 7
        %v571 = vsub.s32 0, %v570
        %v572 = vrot.slane %v555, %v571
        %v573 = vlaneseq
        %v574 = vshrl.u32 %v573, 7
        %v575 = vsub.s32 0, %v574
        %v576 = vrot.slane %v557, %v575
        %v577 = vlaneseq
        %v578 = vshrl.u32 %v577, 7
        %v579 = vsub.s32 0, %v578
        %v580 = vrot.slane %v540, %v579
        %v581 = vlaneseq
        %v582 = vshrl.u32 %v581, 7
        %v583 = vsub.s32 0, %v582
        %v584 = vrot.slane %v554, %v583
        %v585 = vlaneseq
        %v586 = vshrl.u32 %v585, 7
        %v587 = vsub.s32 0, %v586
        %v588 = vrot.slane %v556, %v587
        %v589 = vlaneseq
        %v590 = vshrl.u32 %v589, 7
        %v591 = vsub.s32 0, %v590
        %v592 = vrot.slane %v558, %v591
        %593 = vset.pattern.permute.xlu0 0
        %594 = vperm.xlu0 %593, %v564
        %v595 = vpop.permute.xlu0 %594
        %596 = vset.pattern.permute.xlu0 0
        %597 = vperm.xlu0 %596, %v568
        %v598 = vpop.permute.xlu0 %597
        %599 = vset.pattern.permute.xlu0 0
        %600 = vperm.xlu0 %599, %v572
        %v601 = vpop.permute.xlu0 %600
        %602 = vset.pattern.permute.xlu0 0
        %603 = vperm.xlu0 %602, %v576
        %v604 = vpop.permute.xlu0 %603
        %605 = vset.pattern.permute.xlu0 0
        %606 = vperm.xlu0 %605, %v580
        %v607 = vpop.permute.xlu0 %606
        %608 = vset.pattern.permute.xlu0 0
        %609 = vperm.xlu0 %608, %v584
        %v610 = vpop.permute.xlu0 %609
        %611 = vset.pattern.permute.xlu0 0
        %612 = vperm.xlu0 %611, %v588
        %v613 = vpop.permute.xlu0 %612
        %614 = vset.pattern.permute.xlu0 0
        %615 = vperm.xlu0 %614, %v592
        %v616 = vpop.permute.xlu0 %615
        %vm617 = vcmp.lt.s32.totalorder %v560, %v595
        %vm618 = vcmp.lt.s32.totalorder %v560, %v598
        %vm619 = vcmp.lt.s32.totalorder %v560, %v601
        %vm620 = vcmp.lt.s32.totalorder %v560, %v604
        %vm621 = vcmp.lt.s32.totalorder %v560, %v607
        %vm622 = vcmp.lt.s32.totalorder %v560, %v610
        %vm623 = vcmp.lt.s32.totalorder %v560, %v613
        %vm624 = vcmp.lt.s32.totalorder %v560, %v616
        %v625 = vsel %vm617, %v477, -inf
        %v626 = vsel %vm618, %v480, -inf
        %v627 = vsel %vm619, %v485, -inf
        %v628 = vsel %vm620, %v488, -inf
        %v629 = vsel %vm621, %v493, -inf
        %v630 = vsel %vm622, %v496, -inf
        %v631 = vsel %vm623, %v501, -inf
        %v632 = vsel %vm624, %v504, -inf
        %vm633 = vcmask 130048
        %v634 = vsel %vm633, %v625, -inf
        %v635 = vrot.slane %v634, 4
        %v636 = vmax.f32 %v634, %v635
        %v637 = vrot.slane %v636, 2
        %v638 = vmax.f32 %v636, %v637
        %v639 = vrot.slane %v638, 1
        %v640 = vmax.f32 %v638, %v639
        %v641 = vsel %vm633, %v626, -inf
        %v642 = vrot.slane %v641, 4
        %v643 = vmax.f32 %v641, %v642
        %v644 = vrot.slane %v643, 2
        %v645 = vmax.f32 %v643, %v644
        %v646 = vrot.slane %v645, 1
        %v647 = vmax.f32 %v645, %v646
        %v648 = vsel %vm633, %v627, -inf
        %v649 = vrot.slane %v648, 4
        %v650 = vmax.f32 %v648, %v649
        %v651 = vrot.slane %v650, 2
        %v652 = vmax.f32 %v650, %v651
        %v653 = vrot.slane %v652, 1
        %v654 = vmax.f32 %v652, %v653
        %v655 = vsel %vm633, %v628, -inf
        %v656 = vrot.slane %v655, 4
        %v657 = vmax.f32 %v655, %v656
        %v658 = vrot.slane %v657, 2
        %v659 = vmax.f32 %v657, %v658
        %v660 = vrot.slane %v659, 1
        %v661 = vmax.f32 %v659, %v660
        %v662 = vsel %vm633, %v629, -inf
        %v663 = vrot.slane %v662, 4
        %v664 = vmax.f32 %v662, %v663
        %v665 = vrot.slane %v664, 2
        %v666 = vmax.f32 %v664, %v665
        %v667 = vrot.slane %v666, 1
        %v668 = vmax.f32 %v666, %v667
        %v669 = vsel %vm633, %v630, -inf
        %v670 = vrot.slane %v669, 4
        %v671 = vmax.f32 %v669, %v670
        %v672 = vrot.slane %v671, 2
        %v673 = vmax.f32 %v671, %v672
        %v674 = vrot.slane %v673, 1
        %v675 = vmax.f32 %v673, %v674
        %v676 = vsel %vm633, %v631, -inf
        %v677 = vrot.slane %v676, 4
        %v678 = vmax.f32 %v676, %v677
        %v679 = vrot.slane %v678, 2
        %v680 = vmax.f32 %v678, %v679
        %v681 = vrot.slane %v680, 1
        %v682 = vmax.f32 %v680, %v681
        %v683 = vsel %vm633, %v632, -inf
        %v684 = vrot.slane %v683, 4
        %v685 = vmax.f32 %v683, %v684
        %v686 = vrot.slane %v685, 2
        %v687 = vmax.f32 %v685, %v686
        %v688 = vrot.slane %v687, 1
        %v689 = vmax.f32 %v687, %v688
        %vm690 = vcmp.eq.f32.partialorder %v625, %v640
        %vm691 = vcmp.eq.f32.partialorder %v626, %v647
        %vm692 = vcmp.eq.f32.partialorder %v627, %v654
        %vm693 = vcmp.eq.f32.partialorder %v628, %v661
        %vm694 = vcmp.eq.f32.partialorder %v629, %v668
        %vm695 = vcmp.eq.f32.partialorder %v630, %v675
        %vm696 = vcmp.eq.f32.partialorder %v631, %v682
        %vm697 = vcmp.eq.f32.partialorder %v632, %v689
        %v698 = vsel %vm690, %v560, 8
        %v699 = vsel %vm691, %v560, 8
        %v700 = vsel %vm692, %v560, 8
        %v701 = vsel %vm693, %v560, 8
        %v702 = vsel %vm694, %v560, 8
        %v703 = vsel %vm695, %v560, 8
        %v704 = vsel %vm696, %v560, 8
        %v705 = vsel %vm697, %v560, 8
        %v706 = vsel %vm633, %v698, 2147483647
        %v707 = vrot.slane %v706, 4
        %vm708 = vcmp.lt.s32.totalorder %v706, %v707
        %v709 = vsel %vm708, %v706, %v707
        %v710 = vrot.slane %v709, 2
        %vm711 = vcmp.lt.s32.totalorder %v709, %v710
        %v712 = vsel %vm711, %v709, %v710
        %v713 = vrot.slane %v712, 1
        %vm714 = vcmp.lt.s32.totalorder %v712, %v713
        %v715 = vsel %vm714, %v712, %v713
        %v716 = vsel %vm633, %v699, 2147483647
        %v717 = vrot.slane %v716, 4
        %vm718 = vcmp.lt.s32.totalorder %v716, %v717
        %v719 = vsel %vm718, %v716, %v717
        %v720 = vrot.slane %v719, 2
        %vm721 = vcmp.lt.s32.totalorder %v719, %v720
        %v722 = vsel %vm721, %v719, %v720
        %v723 = vrot.slane %v722, 1
        %vm724 = vcmp.lt.s32.totalorder %v722, %v723
        %v725 = vsel %vm724, %v722, %v723
        %v726 = vsel %vm633, %v700, 2147483647
        %v727 = vrot.slane %v726, 4
        %vm728 = vcmp.lt.s32.totalorder %v726, %v727
        %v729 = vsel %vm728, %v726, %v727
        %v730 = vrot.slane %v729, 2
        %vm731 = vcmp.lt.s32.totalorder %v729, %v730
        %v732 = vsel %vm731, %v729, %v730
        %v733 = vrot.slane %v732, 1
        %vm734 = vcmp.lt.s32.totalorder %v732, %v733
        %v735 = vsel %vm734, %v732, %v733
        %v736 = vsel %vm633, %v701, 2147483647
        %v737 = vrot.slane %v736, 4
        %vm738 = vcmp.lt.s32.totalorder %v736, %v737
        %v739 = vsel %vm738, %v736, %v737
        %v740 = vrot.slane %v739, 2
        %vm741 = vcmp.lt.s32.totalorder %v739, %v740
        %v742 = vsel %vm741, %v739, %v740
        %v743 = vrot.slane %v742, 1
        %vm744 = vcmp.lt.s32.totalorder %v742, %v743
        %v745 = vsel %vm744, %v742, %v743
        %v746 = vsel %vm633, %v702, 2147483647
        %v747 = vrot.slane %v746, 4
        %vm748 = vcmp.lt.s32.totalorder %v746, %v747
        %v749 = vsel %vm748, %v746, %v747
        %v750 = vrot.slane %v749, 2
        %vm751 = vcmp.lt.s32.totalorder %v749, %v750
        %v752 = vsel %vm751, %v749, %v750
        %v753 = vrot.slane %v752, 1
        %vm754 = vcmp.lt.s32.totalorder %v752, %v753
        %v755 = vsel %vm754, %v752, %v753
        %v756 = vsel %vm633, %v703, 2147483647
        %v757 = vrot.slane %v756, 4
        %vm758 = vcmp.lt.s32.totalorder %v756, %v757
        %v759 = vsel %vm758, %v756, %v757
        %v760 = vrot.slane %v759, 2
        %vm761 = vcmp.lt.s32.totalorder %v759, %v760
        %v762 = vsel %vm761, %v759, %v760
        %v763 = vrot.slane %v762, 1
        %vm764 = vcmp.lt.s32.totalorder %v762, %v763
        %v765 = vsel %vm764, %v762, %v763
        %v766 = vsel %vm633, %v704, 2147483647
        %v767 = vrot.slane %v766, 4
        %vm768 = vcmp.lt.s32.totalorder %v766, %v767
        %v769 = vsel %vm768, %v766, %v767
        %v770 = vrot.slane %v769, 2
        %vm771 = vcmp.lt.s32.totalorder %v769, %v770
        %v772 = vsel %vm771, %v769, %v770
        %v773 = vrot.slane %v772, 1
        %vm774 = vcmp.lt.s32.totalorder %v772, %v773
        %v775 = vsel %vm774, %v772, %v773
        %v776 = vsel %vm633, %v705, 2147483647
        %v777 = vrot.slane %v776, 4
        %vm778 = vcmp.lt.s32.totalorder %v776, %v777
        %v779 = vsel %vm778, %v776, %v777
        %v780 = vrot.slane %v779, 2
        %vm781 = vcmp.lt.s32.totalorder %v779, %v780
        %v782 = vsel %vm781, %v779, %v780
        %v783 = vrot.slane %v782, 1
        %vm784 = vcmp.lt.s32.totalorder %v782, %v783
        %v785 = vsel %vm784, %v782, %v783
        %vm786 = vcmp.eq.s32.totalorder %v560, %v715
        %vm787 = vcmp.eq.s32.totalorder %v560, %v725
        %vm788 = vcmp.eq.s32.totalorder %v560, %v735
        %vm789 = vcmp.eq.s32.totalorder %v560, %v745
        %vm790 = vcmp.eq.s32.totalorder %v560, %v755
        %vm791 = vcmp.eq.s32.totalorder %v560, %v765
        %vm792 = vcmp.eq.s32.totalorder %v560, %v775
        %vm793 = vcmp.eq.s32.totalorder %v560, %v785
        %v794 = vsel %vm786, -inf, %v625
        %v795 = vsel %vm787, -inf, %v626
        %v796 = vsel %vm788, -inf, %v627
        %v797 = vsel %vm789, -inf, %v628
        %v798 = vsel %vm790, -inf, %v629
        %v799 = vsel %vm791, -inf, %v630
        %v800 = vsel %vm792, -inf, %v631
        %v801 = vsel %vm793, -inf, %v632
        %v802 = vsel %vm633, %v794, -inf
        %v803 = vrot.slane %v802, 4
        %v804 = vmax.f32 %v802, %v803
        %v805 = vrot.slane %v804, 2
        %v806 = vmax.f32 %v804, %v805
        %v807 = vrot.slane %v806, 1
        %v808 = vmax.f32 %v806, %v807
        %v809 = vsel %vm633, %v795, -inf
        %v810 = vrot.slane %v809, 4
        %v811 = vmax.f32 %v809, %v810
        %v812 = vrot.slane %v811, 2
        %v813 = vmax.f32 %v811, %v812
        %v814 = vrot.slane %v813, 1
        %v815 = vmax.f32 %v813, %v814
        %v816 = vsel %vm633, %v796, -inf
        %v817 = vrot.slane %v816, 4
        %v818 = vmax.f32 %v816, %v817
        %v819 = vrot.slane %v818, 2
        %v820 = vmax.f32 %v818, %v819
        %v821 = vrot.slane %v820, 1
        %v822 = vmax.f32 %v820, %v821
        %v823 = vsel %vm633, %v797, -inf
        %v824 = vrot.slane %v823, 4
        %v825 = vmax.f32 %v823, %v824
        %v826 = vrot.slane %v825, 2
        %v827 = vmax.f32 %v825, %v826
        %v828 = vrot.slane %v827, 1
        %v829 = vmax.f32 %v827, %v828
        %v830 = vsel %vm633, %v798, -inf
        %v831 = vrot.slane %v830, 4
        %v832 = vmax.f32 %v830, %v831
        %v833 = vrot.slane %v832, 2
        %v834 = vmax.f32 %v832, %v833
        %v835 = vrot.slane %v834, 1
        %v836 = vmax.f32 %v834, %v835
        %v837 = vsel %vm633, %v799, -inf
        %v838 = vrot.slane %v837, 4
        %v839 = vmax.f32 %v837, %v838
        %v840 = vrot.slane %v839, 2
        %v841 = vmax.f32 %v839, %v840
        %v842 = vrot.slane %v841, 1
        %v843 = vmax.f32 %v841, %v842
        %v844 = vsel %vm633, %v800, -inf
        %v845 = vrot.slane %v844, 4
        %v846 = vmax.f32 %v844, %v845
        %v847 = vrot.slane %v846, 2
        %v848 = vmax.f32 %v846, %v847
        %v849 = vrot.slane %v848, 1
        %v850 = vmax.f32 %v848, %v849
        %v851 = vsel %vm633, %v801, -inf
        %v852 = vrot.slane %v851, 4
        %v853 = vmax.f32 %v851, %v852
        %v854 = vrot.slane %v853, 2
        %v855 = vmax.f32 %v853, %v854
        %v856 = vrot.slane %v855, 1
        %v857 = vmax.f32 %v855, %v856
        %vm858 = vcmp.ge.s32.totalorder %v533, 2
        %vm859 = vcmp.ge.s32.totalorder %v547, 2
        %vm860 = vcmp.ge.s32.totalorder %v555, 2
        %vm861 = vcmp.ge.s32.totalorder %v557, 2
        %vm862 = vcmp.ge.s32.totalorder %v540, 2
        %vm863 = vcmp.ge.s32.totalorder %v554, 2
        %vm864 = vcmp.ge.s32.totalorder %v556, 2
        %vm865 = vcmp.ge.s32.totalorder %v558, 2
        %v866 = vadd.f32 %v640, %v808
        %v867 = vadd.f32 %v647, %v815
        %v868 = vadd.f32 %v654, %v822
        %v869 = vadd.f32 %v661, %v829
        %v870 = vadd.f32 %v668, %v836
        %v871 = vadd.f32 %v675, %v843
        %v872 = vadd.f32 %v682, %v850
        %v873 = vadd.f32 %v689, %v857
        %v874 = vmul.f32 %v866, 0.5
        %v875 = vmul.f32 %v867, 0.5
        %v876 = vmul.f32 %v868, 0.5
        %v877 = vmul.f32 %v869, 0.5
        %v878 = vmul.f32 %v870, 0.5
        %v879 = vmul.f32 %v871, 0.5
        %v880 = vmul.f32 %v872, 0.5
        %v881 = vmul.f32 %v873, 0.5
        %v882 = vsel %vm858, 1, 0
        %v883 = vsel %vm859, 1, 0
        %v884 = vsel %vm860, 1, 0
        %v885 = vsel %vm861, 1, 0
        %v886 = vsel %vm862, 1, 0
        %v887 = vsel %vm863, 1, 0
        %v888 = vsel %vm864, 1, 0
        %v889 = vsel %vm865, 1, 0
        %890 = vset.pattern.permute.xlu0 0
        %891 = vperm.xlu0 %890, %v882
        %v892 = vpop.permute.xlu0 %891
        %v893 = vlaneseq
        %v894 = vshrl.u32 %v893, 7
        %v895 = vsub.s32 0, %v894
        %v896 = vrot.slane %v892, %v895
        %897 = vset.pattern.permute.xlu0 0
        %898 = vperm.xlu0 %897, %v883
        %v899 = vpop.permute.xlu0 %898
        %v900 = vlaneseq
        %v901 = vshrl.u32 %v900, 7
        %v902 = vsub.s32 0, %v901
        %v903 = vrot.slane %v899, %v902
        %904 = vset.pattern.permute.xlu0 0
        %905 = vperm.xlu0 %904, %v884
        %v906 = vpop.permute.xlu0 %905
        %v907 = vlaneseq
        %v908 = vshrl.u32 %v907, 7
        %v909 = vsub.s32 0, %v908
        %v910 = vrot.slane %v906, %v909
        %911 = vset.pattern.permute.xlu0 0
        %912 = vperm.xlu0 %911, %v885
        %v913 = vpop.permute.xlu0 %912
        %v914 = vlaneseq
        %v915 = vshrl.u32 %v914, 7
        %v916 = vsub.s32 0, %v915
        %v917 = vrot.slane %v913, %v916
        %918 = vset.pattern.permute.xlu0 0
        %919 = vperm.xlu0 %918, %v886
        %v920 = vpop.permute.xlu0 %919
        %v921 = vlaneseq
        %v922 = vshrl.u32 %v921, 7
        %v923 = vsub.s32 0, %v922
        %v924 = vrot.slane %v920, %v923
        %925 = vset.pattern.permute.xlu0 0
        %926 = vperm.xlu0 %925, %v887
        %v927 = vpop.permute.xlu0 %926
        %v928 = vlaneseq
        %v929 = vshrl.u32 %v928, 7
        %v930 = vsub.s32 0, %v929
        %v931 = vrot.slane %v927, %v930
        %932 = vset.pattern.permute.xlu0 0
        %933 = vperm.xlu0 %932, %v888
        %v934 = vpop.permute.xlu0 %933
        %v935 = vlaneseq
        %v936 = vshrl.u32 %v935, 7
        %v937 = vsub.s32 0, %v936
        %v938 = vrot.slane %v934, %v937
        %939 = vset.pattern.permute.xlu0 0
        %940 = vperm.xlu0 %939, %v889
        %v941 = vpop.permute.xlu0 %940
        %v942 = vlaneseq
        %v943 = vshrl.u32 %v942, 7
        %v944 = vsub.s32 0, %v943
        %v945 = vrot.slane %v941, %v944
        %vm946 = vcmp.eq.s32.totalorder %v896, 1
        %vm947 = vcmp.eq.s32.totalorder %v903, 1
        %vm948 = vcmp.eq.s32.totalorder %v910, 1
        %vm949 = vcmp.eq.s32.totalorder %v917, 1
        %vm950 = vcmp.eq.s32.totalorder %v924, 1
        %vm951 = vcmp.eq.s32.totalorder %v931, 1
        %vm952 = vcmp.eq.s32.totalorder %v938, 1
        %vm953 = vcmp.eq.s32.totalorder %v945, 1
        %v954 = vsel %vm946, %v874, %v640
        %v955 = vsel %vm947, %v875, %v647
        %v956 = vsel %vm948, %v876, %v654
        %v957 = vsel %vm949, %v877, %v661
        %v958 = vsel %vm950, %v878, %v668
        %v959 = vsel %vm951, %v879, %v675
        %v960 = vsel %vm952, %v880, %v682
        %v961 = vsel %vm953, %v881, %v689
        %v962 = vld [vmem:[%s5] sm:$0x1]
        %v964 = vlaneseq
        %v965 = vshrl.u32 %v964, 7
        %v966 = vsub.s32 0, %v965
        %v967 = vrot.slane %v962, %v966
        %v969 = vadd.f32 %v954, %v967
        %v970 = vadd.f32 %v955, %v967
        %v971 = vadd.f32 %v956, %v967
        %v972 = vadd.f32 %v957, %v967
        %v973 = vadd.f32 %v958, %v967
        %v974 = vadd.f32 %v959, %v967
        %v975 = vadd.f32 %v960, %v967
        %v976 = vadd.f32 %v961, %v967
        %v985 = vrot.slane %v970, 7
        %vm986 = vcmask 1041409
        %v987 = vsel %vm986, %v985, %v969
        %v988 = vrot.slane %v971, 6
        %vm989 = vcmask 1042434
        %v990 = vsel %vm989, %v988, %v987
        %v991 = vrot.slane %v972, 5
        %vm992 = vcmask 1043459
        %v993 = vsel %vm992, %v991, %v990
        %v994 = vrot.slane %v973, 4
        %vm995 = vcmask 1044484
        %v996 = vsel %vm995, %v994, %v993
        %v997 = vrot.slane %v974, 3
        %vm998 = vcmask 1045509
        %v999 = vsel %vm998, %v997, %v996
        %v1000 = vrot.slane %v975, 2
        %vm1001 = vcmask 1046534
        %v1002 = vsel %vm1001, %v1000, %v999
        %v1003 = vrot.slane %v976, 1
        %vm1004 = vcmask 1047559
        %v1005 = vsel %vm1004, %v1003, %v1002
        %1007 = vst.msk [vmem:[%s297] sm:$0xff] %vm633, %v1005
        %p1008 = scmp.lt.s32.totalorder %s20, 2
        %s1009 = scalar_select %p1008, %s20, 2
        %s1010 = smul.addr %s1009, 8
        %s1011 = scalar_lea.vmem %s6, %s1010
        // Predicated region
        $region49: #{tpu_custom_call.1} parent=43 // pred_check
          %p1012 = pneg %p174
        $region50: #{tpu_custom_call.1} parent=43 // pred_check_branch
          %1014 = sbr.rel (%p1012) target = $region52
        $region51: #{tpu_custom_call.1} parent=43 // pred_region
          _
        $region52: #{tpu_custom_call.1} parent=43 // pred_fallthru
          _
      $region44: #{tpu_custom_call.1} parent=5 // pred_fallthru
        _
      %p1015 = scmp.le.s32.totalorder 2, %s15
      // Predicated region
      $region53: #{tpu_custom_call.1} parent=5 // pred_check
        %p1016 = pneg %p1015
      $region54: #{tpu_custom_call.1} parent=5 // pred_check_branch
        %1018 = sbr.rel (%p1016) target = $region56
      $region55: #{tpu_custom_call.1} parent=5 // pred_region
        %s1019 = ssub.s32 %s15, 2
        // Predicated region
        $region57: #{tpu_custom_call.1} parent=55 // pred_check
          %p1020 = pneg %p180
        $region58: #{tpu_custom_call.1} parent=55 // pred_check_branch
          %1022 = sbr.rel (%p1020) target = $region60
        $region59: #{tpu_custom_call.1} parent=55 // pred_region
          %p1023 = scmp.lt.s32.totalorder %s21, 2
          %s1024 = scalar_select %p1023, %s21, 2
          %s1025 = smul.addr %s1024, 8
          %s1026 = scalar_lea.vmem %s6, %s1025
        $region60: #{tpu_custom_call.1} parent=55 // pred_fallthru
          _
      $region56: #{tpu_custom_call.1} parent=5 // pred_fallthru
        _
    $region6: #{tpu_custom_call.1} parent=1 // loop_footer
      %s19 = sadd.s32 1, %s15
    $region7: #{tpu_custom_call.1} parent=1 // loop_footer_branch
      %14 = sbr.rel target = $region3
    $region8: #{tpu_custom_call.1} parent=1 // loop_exit
      _
    %1027 = vsyncpa [#allocation3], 1
    %s1028 = scalar_lea.sflag [#allocation3], 1
    %1029 = vsyncpa %s1028, 1

</llo_original>
